<compile_context>
chip_gen: v7x
topology: tpu7x:2x2x1
jax: 0.10.0
libtpu: 0.0.40
codegen_flags: <defaults>
</compile_context>

<pallas_src>
import jax
import jax.numpy as jnp
from jax.experimental import pallas as pl
from jax.experimental.pallas import tpu as pltpu

_MIB = 1024 * 1024


def build_positional_encoding(d_model: int, max_len: int = 5000,
                              dtype=jnp.float32) -> jnp.ndarray:
    """Deterministic sinusoidal table, identical math to the PyTorch __init__.

    Cast to the activation dtype here (one time) rather than per forward call.
    """
    assert d_model % 2 == 0, "d_model must be even (same assumption as the PyTorch module)"
    position = jnp.arange(0, max_len, dtype=jnp.float32)[:, None]           # (max_len, 1)
    div_term = jnp.exp(
        jnp.arange(0, d_model, 2, dtype=jnp.float32)
        * (-jnp.log(jnp.float32(10000.0)) / d_model)
    )                                                                        # (d_model/2,)
    pe = jnp.zeros((max_len, d_model), dtype=jnp.float32)
    pe = pe.at[:, 0::2].set(jnp.sin(position * div_term))
    pe = pe.at[:, 1::2].set(jnp.cos(position * div_term))
    return pe[None, :, :].astype(dtype)                                      # (1, max_len, d_model)


def _add_pe_kernel(x_ref, pe_ref, o_ref):
    # Pure VPU broadcast-add on VMEM tiles (works for both the 3-D and the
    # folded 2-D block shapes).  The kernel is HBM-bandwidth bound.
    o_ref[...] = (x_ref[...] + pe_ref[...]).astype(o_ref.dtype)


def _round_up(a: int, b: int) -> int:
    return ((a + b - 1) // b) * b


def _largest_divisor_leq(n: int, cap: int) -> int:
    cap = max(1, min(n, cap))
    for d in range(cap, 0, -1):
        if n % d == 0:
            return d
    return 1


def _vmem_budgets():
    """(tile_bytes, vmem_limit_bytes) tuned per TPU generation."""
    try:
        cap = pltpu.get_tpu_info().vmem_capacity_bytes
    except Exception:
        cap = None
    if cap is not None and cap >= 100 * _MIB:       # v5e / v6e: 128 MiB physical VMEM
        return 6 * _MIB, 64 * _MIB
    # v7x (64 MiB per TensorCore) or unknown: conservative budget.
    return 4 * _MIB, 48 * _MIB


def _forward_3d(x, pe_full, tile_bytes, vmem_limit_bytes, cost, donate_x):
    """Path for D % 128 == 0: (B_blk, TS, D) blocks, PE resident across batch."""
    B, S, D = x.shape
    max_len = pe_full.shape[1]
    itemsize = jnp.dtype(x.dtype).itemsize

    # Batch rows per block (divisor of B, capped so TS can still be >= 8 rows).
    b_cap = max(1, tile_bytes // (8 * D * itemsize))
    b_blk = _largest_divisor_leq(B, min(8, b_cap))

    # Sequence rows per block: multiple of 8, sized to the tile byte budget.
    rows = max(8, tile_bytes // max(1, b_blk * D * itemsize))
    ts = max(8, min(_round_up(S, 8), (rows // 8) * 8))

    # Pad S so every block is full (ragged-S handled by pad + output slice).
    s_pad = _round_up(S, ts)
    x_in = x if s_pad == S else jnp.pad(x, ((0, 0), (0, s_pad - S), (0, 0)))
    pe_in = pe_full if s_pad <= max_len else jnp.pad(
        pe_full, ((0, 0), (0, s_pad - max_len), (0, 0)))

    grid = (s_pad // ts, B // b_blk)                 # batch innermost -> PE tile stays resident

    kwargs = {}
    if donate_x and s_pad == S:
        kwargs["input_output_aliases"] = {0: 0}

    out = pl.pallas_call(
        _add_pe_kernel,
        out_shape=jax.ShapeDtypeStruct((B, s_pad, D), x.dtype),
        grid_spec=pltpu.PrefetchScalarGridSpec(
            num_scalar_prefetch=0,
            grid=grid,
            in_specs=[
                pl.BlockSpec((b_blk, ts, D), lambda s, b: (b, s, 0)),   # x tile
                pl.BlockSpec((1, ts, D), lambda s, b: (0, s, 0)),       # PE tile (const over b)
            ],
            out_specs=pl.BlockSpec((b_blk, ts, D), lambda s, b: (b, s, 0)),
        ),
        compiler_params=pltpu.CompilerParams(
            dimension_semantics=("parallel", "parallel"),
            vmem_limit_bytes=vmem_limit_bytes,
        ),
        cost_estimate=cost,
        **kwargs,
    )(x_in, pe_in)

    return out[:, :S, :] if s_pad > S else out


def _forward_folded(x, pe_full, tile_bytes, vmem_limit_bytes, cost, donate_x):
    """Path for D % 128 != 0: fold (S, D) into one lane-dense last dim."""
    B, S, D = x.shape
    itemsize = jnp.dtype(x.dtype).itemsize
    L = S * D

    # One-time (per call) lane-dense repack of the S-row PE window.
    pe_flat = pe_full[:, :S, :].reshape(1, L)
    x_flat = x.reshape(B, L)

    # Tile width along the flattened dim: multiple of 128, within byte budget.
    t = max(128, (tile_bytes // max(1, B * itemsize)) // 128 * 128)
    t = min(t, _round_up(L, 128))
    l_pad = _round_up(L, t)
    if l_pad > L:
        x_flat = jnp.pad(x_flat, ((0, 0), (0, l_pad - L)))
        pe_flat = jnp.pad(pe_flat, ((0, 0), (0, l_pad - L)))

    grid = (l_pad // t,)

    kwargs = {}
    if donate_x and l_pad == L:
        kwargs["input_output_aliases"] = {0: 0}

    out = pl.pallas_call(
        _add_pe_kernel,
        out_shape=jax.ShapeDtypeStruct((B, l_pad), x.dtype),
        grid_spec=pltpu.PrefetchScalarGridSpec(
            num_scalar_prefetch=0,
            grid=grid,
            in_specs=[
                pl.BlockSpec((B, t), lambda i: (0, i)),   # x slab (all batch rows)
                pl.BlockSpec((1, t), lambda i: (0, i)),   # PE slab (broadcast over batch)
            ],
            out_specs=pl.BlockSpec((B, t), lambda i: (0, i)),
        ),
        compiler_params=pltpu.CompilerParams(
            dimension_semantics=("parallel",),
            vmem_limit_bytes=vmem_limit_bytes,
        ),
        cost_estimate=cost,
        **kwargs,
    )(x_flat, pe_flat)

    if l_pad > L:
        out = out[:, :L]
    return out.reshape(B, S, D)


def positional_encoding_forward(
    x: jnp.ndarray,
    pe_full: jnp.ndarray,
    *,
    tile_bytes: int | None = None,
    vmem_limit_bytes: int | None = None,
    donate_x: bool = False,
) -> jnp.ndarray:
    """x: (B, S, D); pe_full: (1, max_len, D) with max_len >= S. Returns x + pe[:, :S]."""
    B, S, D = x.shape
    assert pe_full.ndim == 3 and pe_full.shape[0] == 1 and pe_full.shape[2] == D
    assert pe_full.shape[1] >= S, "max_len must be >= seq_len"

    if tile_bytes is None or vmem_limit_bytes is None:
        tb_default, vl_default = _vmem_budgets()
        tile_bytes = tile_bytes if tile_bytes is not None else tb_default
        vmem_limit_bytes = vmem_limit_bytes if vmem_limit_bytes is not None else vl_default

    if pe_full.dtype != x.dtype:
        # Fallback only: prefer building the table in the activation dtype
        # (build_positional_encoding(..., dtype=x.dtype)) so this full-table
        # convert is not re-emitted every forward call.  Note: doing the add in
        # x.dtype is a small numeric delta vs PyTorch's f32 buffer promotion.
        pe_full = pe_full.astype(x.dtype)

    itemsize = jnp.dtype(x.dtype).itemsize
    cost = pl.CostEstimate(
        flops=B * S * D,
        transcendentals=0,
        bytes_accessed=(2 * B * S * D + S * D) * itemsize,
    )

    if D % 128 == 0:
        return _forward_3d(x, pe_full, tile_bytes, vmem_limit_bytes, cost, donate_x)
    return _forward_folded(x, pe_full, tile_bytes, vmem_limit_bytes, cost, donate_x)


if __name__ == "__main__":
    # 1) Small shapes consistent with the module's forward: (batch, seq, d_model).
    #    D=32 -> folded lane-dense path.
    B, S, D = 2, 8, 32
    MAX_LEN = 64
    key = jax.random.PRNGKey(0)
    x = jax.random.normal(key, (B, S, D), dtype=jnp.float32)
    pe_full = build_positional_encoding(D, MAX_LEN, dtype=x.dtype)

    out = jax.block_until_ready(positional_encoding_forward(x, pe_full))
    ref = x + pe_full[:, :S, :]
    assert out.shape == (B, S, D)
    assert jnp.allclose(out, ref, atol=1e-6), "mismatch vs reference (folded path)"

    # 2) D multiple of 128, small tile budget -> multi-tile 3-D path with
    #    batch blocking and PE residency actually exercised.
    B2, S2, D2 = 2, 64, 128
    x2 = jax.random.normal(jax.random.PRNGKey(1), (B2, S2, D2), dtype=jnp.float32)
    pe2 = build_positional_encoding(D2, 256, dtype=x2.dtype)
    out2 = jax.block_until_ready(
        positional_encoding_forward(x2, pe2, tile_bytes=16 * 1024)  # -> TS=16, 4 seq tiles
    )
    assert jnp.allclose(out2, x2 + pe2[:, :S2, :], atol=1e-6), "mismatch (3-D tiled path)"

    # 3) Ragged sequence length (S % 8 != 0) -> pad-and-slice path, still tiled.
    B3, S3, D3 = 2, 10, 128
    x3 = jax.random.normal(jax.random.PRNGKey(2), (B3, S3, D3), dtype=jnp.float32)
    pe3 = build_positional_encoding(D3, 64, dtype=x3.dtype)
    out3 = jax.block_until_ready(positional_encoding_forward(x3, pe3))
    assert jnp.allclose(out3, x3 + pe3[:, :S3, :], atol=1e-6), "mismatch (ragged-S path)"

    # 4) Folded path with multiple flattened tiles.
    B4, S4, D4 = 2, 16, 32
    x4 = jax.random.normal(jax.random.PRNGKey(3), (B4, S4, D4), dtype=jnp.float32)
    pe4 = build_positional_encoding(D4, 64, dtype=x4.dtype)
    out4 = jax.block_until_ready(
        positional_encoding_forward(x4, pe4, tile_bytes=2048)  # -> T=256, 2 flat tiles
    )
    assert jnp.allclose(out4, x4 + pe4[:, :S4, :], atol=1e-6), "mismatch (folded multi-tile)"

    print("KERNEL_OK")
</pallas_src>

<mosaic_0001>
module attributes {stable_mosaic.version = 11 : i64} {
  func.func @_add_pe_kernel(%arg0: i32, %arg1: memref<2x256xf32, #tpu.memory_space<vmem>>, %arg2: memref<1x256xf32, #tpu.memory_space<vmem>>, %arg3: memref<2x256xf32, #tpu.memory_space<vmem>>) attributes {dimension_semantics = [#tpu.dimension_semantics<parallel>], iteration_bounds = array<i64: 1>, scalar_prefetch = 0 : i64, scratch_operands = 0 : i64, tpu.core_type = #tpu.core_type<tc>, window_params = [{transform_indices = @transform_0, window_bounds = array<i64: 2, 256>}, {transform_indices = @transform_1, window_bounds = array<i64: 1, 256>}, {transform_indices = @transform_2, window_bounds = array<i64: 2, 256>}]} {
    %c0 = arith.constant 0 : index
    %c0_0 = arith.constant 0 : index
    %0 = vector.load %arg1[%c0, %c0_0] : memref<2x256xf32, #tpu.memory_space<vmem>>, vector<2x256xf32>
    %c0_1 = arith.constant 0 : index
    %c0_2 = arith.constant 0 : index
    %1 = vector.load %arg2[%c0_1, %c0_2] : memref<1x256xf32, #tpu.memory_space<vmem>>, vector<1x256xf32>
    %2 = vector.broadcast %1 : vector<1x256xf32> to vector<2x256xf32>
    %3 = arith.addf %0, %2 : vector<2x256xf32>
    %c0_3 = arith.constant 0 : index
    %c0_4 = arith.constant 0 : index
    %4 = vector.load %arg3[%c0_3, %c0_4] : memref<2x256xf32, #tpu.memory_space<vmem>>, vector<2x256xf32>
    tpu.vector_store %arg3[%c0_3, %c0_4], %3 {strides = array<i32>} : memref<2x256xf32, #tpu.memory_space<vmem>>, vector<2x256xf32>,
    return
  }
  func.func @transform_0(%arg0: i32) -> (i32, i32) {
    %c0_i32 = arith.constant 0 : i32
    %c0_i32_0 = arith.constant 0 : i32
    return %c0_i32, %arg0 : i32, i32
  }
  func.func @transform_1(%arg0: i32) -> (i32, i32) {
    %c0_i32 = arith.constant 0 : i32
    %c0_i32_0 = arith.constant 0 : i32
    return %c0_i32, %arg0 : i32, i32
  }
  func.func @transform_2(%arg0: i32) -> (i32, i32) {
    %c0_i32 = arith.constant 0 : i32
    %c0_i32_0 = arith.constant 0 : i32
    return %c0_i32, %arg0 : i32, i32
  }
}

</mosaic_0001>

<llo_original>
// kernel: tpu_custom_call.1
$region0: #{tpu_custom_call.1}
  #allocation0 [shape = 'u32[]', space=smem, size = 0x4, offset = 0x4, fixed_abs, tag = 'smem constant byte address 0x4 - core index']
  #allocation1 [shape = 'u32[144,128]{1,0:T(1,128)}', space=vmem, size = 0x12000, scoped, tag = 'internal scratch']
  %s0 = inlined_call_operand.hbm [shape: f32[2,256], index: 0, kind: input, shape index: {}]
  %s1 = inlined_call_operand.vmem [shape: f32[1,256], index: 1, kind: input, shape index: {}]
  %s2 = inlined_call_operand.hbm [shape: f32[2,256], index: 2, kind: output, shape index: {}]
  %s3 = sld [smem:[#allocation0]]
  $region22: #{tpu_custom_call.1} parent=0
    _
  %s5 = ssub.s32 1, %s3
  %s6 = scalar_select 0, %s5, %s3
  $region1: #{tpu_custom_call.1} parent=0
    #allocation2 [shape = 'u8[2048]{0}', space=vmem, size = 0x800, scoped, tag = 'input window, operand 0, single buffered']
    #allocation3 [shape = 's32[1]{0}', space=sflag, size = 0x4, scoped, tag = 'scoped memory for tpu_custom_call.1']
    #allocation4 [shape = 's32[1]{0}', space=sflag, size = 0x4, scoped, tag = 'scoped memory for tpu_custom_call.1']
    #allocation5 [shape = 'u8[2048]{0}', space=vmem, size = 0x800, scoped, tag = 'output window, operand 0, single buffered']
    %7 = vsyncpa [#allocation3], 0
    %8 = vsyncpa [#allocation4], 0
    // Predicated region
    $region2: #{tpu_custom_call.1} parent=1 // pred_check
      _
    $region3: #{tpu_custom_call.1} parent=1 // pred_check_branch
      %10 = sbr.rel (0) target = $region5
    $region4: #{tpu_custom_call.1} parent=1 // pred_region
      %s12 = ssub.s32 64, 64
      %13 = vsyncadd [#allocation3], %s12
      %s15 = sshll.u32 [#allocation2], 4
      %s16 = int_to_ptr.vmem [resolvable:$true] %s15
      %18 = dma.hbm_to_vmem [thread:$0]  %s0, 64, %s16, [#allocation3]
    $region5: #{tpu_custom_call.1} parent=1 // pred_fallthru
      _
    // Predicated region
    $region6: #{tpu_custom_call.1} parent=1 // pred_check
      _
    $region7: #{tpu_custom_call.1} parent=1 // pred_check_branch
      %20 = sbr.rel (0) target = $region9
    $region8: #{tpu_custom_call.1} parent=1 // pred_region
      _
    $region9: #{tpu_custom_call.1} parent=1 // pred_fallthru
      _
    // Predicated region
    $region10: #{tpu_custom_call.1} parent=1 // pred_check
      _
    $region11: #{tpu_custom_call.1} parent=1 // pred_check_branch
      %22 = sbr.rel (0) target = $region13
    $region12: #{tpu_custom_call.1} parent=1 // pred_region
      %23 = dma.done [#allocation3], 64
    $region13: #{tpu_custom_call.1} parent=1 // pred_fallthru
      _
    %v24 = vld [vmem:[#allocation2] sm:$0xf]
    %v25 = vld [vmem:[%s1] sm:$0x3]
    %v27 = vlaneseq
    %v28 = vshrl.u32 %v27, 7
    %v29 = vsub.s32 0, %v28
    %v30 = vrot.slane %v25, %v29
    %v31 = vlaneseq
    %v32 = vshrl.u32 %v31, 7
    %v33 = vsub.s32 1, %v32
    %v34 = vrot.slane %v25, %v33
    %v35 = vcombine.low %v30, %v34
    %v37 = vunpack.c.l.s4 1983009808
    %v38 = vunpack.c.0.s8 %v37
    %v39 = vlaneseq
    %v40 = vshrl.u32 %v39, 7
    %v41 = vsub.s32 %v38, %v40
    %v42 = vrot.slane %v35, %v41
    %v44 = vadd.f32 %v24, %v42
    %45 = vst [vmem:[#allocation5] sm:$0xf] %v44
    // Predicated region
    $region14: #{tpu_custom_call.1} parent=1 // pred_check
      _
    $region15: #{tpu_custom_call.1} parent=1 // pred_check_branch
      %47 = sbr.rel (0) target = $region17
    $region16: #{tpu_custom_call.1} parent=1 // pred_region
      %s49 = ssub.s32 64, 64
      %50 = vsyncadd [#allocation4], %s49
      %s52 = sshll.u32 [#allocation5], 4
      %s53 = int_to_ptr.vmem [resolvable:$true] %s52
      %55 = dma.vmem_to_hbm [thread:$0]  %s53, 64, %s2, [#allocation4]
    $region17: #{tpu_custom_call.1} parent=1 // pred_fallthru
      _
    // Predicated region
    $region18: #{tpu_custom_call.1} parent=1 // pred_check
      _
    $region19: #{tpu_custom_call.1} parent=1 // pred_check_branch
      %57 = sbr.rel (0) target = $region21
    $region20: #{tpu_custom_call.1} parent=1 // pred_region
      %58 = dma.done [#allocation4], 64
    $region21: #{tpu_custom_call.1} parent=1 // pred_fallthru
      _
    %59 = vsyncpa [#allocation3], 1
    %60 = vsyncpa [#allocation4], 1

</llo_original>
